<compile_context>
chip_gen: v7x
topology: tpu7x:2x2x1
jax: 0.10.0
libtpu: 0.0.40
codegen_flags: <defaults>
</compile_context>

<pallas_src>
import jax
import jax.numpy as jnp
from jax.experimental import pallas as pl
from jax.experimental.pallas import tpu as pltpu

INPUT_SIZE = 784
HIDDEN_SIZE = 100
N_CLASSES = 10

HIDDEN_PAD = 128   # lane-aligned hidden width (do NOT widen to 256 -- MXU has slack)
OUT_PAD = 128      # lane-aligned output width (sliced back to N_CLASSES)
MAX_TB = 1024      # max batch tile (fits comfortably in scoped VMEM everywhere)


def _round_up(x, m):
    return ((x + m - 1) // m) * m


def _choose_tile(B):
    """Batch tile: multiple of 16 (bf16 sublane tile for the output block),
    capped at MAX_TB, and >= 2 grid steps for B > 32 (v7x megacore)."""
    if B <= 32:
        return _round_up(max(B, 1), 16)
    return min(MAX_TB, _round_up(pl.cdiv(B, 2), 16))


def _mlp_kernel(x_ref, w1_ref, b1_ref, w2_ref, b2_ref, o_ref):
    # Fused hot path for one batch tile:
    #   in-kernel f32->bf16 cast -> bf16 matmul (f32 acc) -> f32 bias + ReLU
    #   -> bf16 matmul (f32 acc) -> f32 bias -> bf16 lane-dense store.
    x = x_ref[...].astype(jnp.bfloat16)                   # free VPU cast
    h = jnp.dot(x, w1_ref[...], preferred_element_type=jnp.float32)
    h = jnp.maximum(h + b1_ref[...], 0.0)                 # f32 VPU, [TB, 128]
    out = jnp.dot(h.astype(jnp.bfloat16), w2_ref[...],
                  preferred_element_type=jnp.float32)
    o_ref[...] = (out + b2_ref[...]).astype(o_ref.dtype)  # unmasked bf16 vst


def prepack_params(w1, b1, w2, b2):
    """One-time pad/cast of the parameters (hoist out of the per-call path).

    Args (as [in, out] layout, i.e. transpose of nn.Linear's [out, in]):
      w1: [784, 100], b1: [100], w2: [100, 10], b2: [10]
    Returns lane-aligned bf16 weights and f32 biases.
    """
    w1_p = (jnp.zeros((INPUT_SIZE, HIDDEN_PAD), jnp.bfloat16)
            .at[:, :HIDDEN_SIZE].set(w1.astype(jnp.bfloat16)))
    b1_p = (jnp.zeros((1, HIDDEN_PAD), jnp.float32)
            .at[0, :HIDDEN_SIZE].set(b1.reshape(-1).astype(jnp.float32)))
    w2_p = (jnp.zeros((HIDDEN_PAD, OUT_PAD), jnp.bfloat16)
            .at[:HIDDEN_SIZE, :N_CLASSES].set(w2.astype(jnp.bfloat16)))
    b2_p = (jnp.zeros((1, OUT_PAD), jnp.float32)
            .at[0, :N_CLASSES].set(b2.reshape(-1).astype(jnp.float32)))
    return w1_p, b1_p, w2_p, b2_p


def neural_net_forward_packed(x, w1_p, b1_p, w2_p, b2_p):
    """Forward pass with pre-packed params.  x: [B, 784] f32 (bf16 also OK)."""
    B = x.shape[0]
    tb = _choose_tile(B)
    grid = (pl.cdiv(B, tb),)

    flops = 2 * B * (INPUT_SIZE * HIDDEN_PAD + HIDDEN_PAD * OUT_PAD)
    bytes_accessed = (
        B * INPUT_SIZE * x.dtype.itemsize              # x read once
        + w1_p.size * 2 + w2_p.size * 2                # bf16 weights
        + b1_p.size * 4 + b2_p.size * 4                # f32 biases
        + B * OUT_PAD * 2                              # bf16 output writeback
    )

    out_padded = pl.pallas_call(
        _mlp_kernel,
        out_shape=jax.ShapeDtypeStruct((B, OUT_PAD), jnp.bfloat16),
        grid_spec=pltpu.PrefetchScalarGridSpec(
            num_scalar_prefetch=0,
            grid=grid,
            in_specs=[
                pl.BlockSpec((tb, INPUT_SIZE), lambda i: (i, 0)),          # x tile
                pl.BlockSpec((INPUT_SIZE, HIDDEN_PAD), lambda i: (0, 0)),  # w1 resident
                pl.BlockSpec((1, HIDDEN_PAD), lambda i: (0, 0)),           # b1 resident
                pl.BlockSpec((HIDDEN_PAD, OUT_PAD), lambda i: (0, 0)),     # w2 resident
                pl.BlockSpec((1, OUT_PAD), lambda i: (0, 0)),              # b2 resident
            ],
            out_specs=pl.BlockSpec((tb, OUT_PAD), lambda i: (i, 0)),
        ),
        compiler_params=pltpu.CompilerParams(
            dimension_semantics=("parallel",),   # megacore sharding on v7x
        ),
        cost_estimate=pl.CostEstimate(
            flops=flops, transcendentals=0, bytes_accessed=bytes_accessed),
    )(x, w1_p, b1_p, w2_p, b2_p)

    # Slice away lane padding; upcast the bf16 logits to f32.
    return out_padded[:, :N_CLASSES].astype(jnp.float32)


def neural_net_forward(x, w1, b1, w2, b2):
    """Convenience wrapper: prepack params then run the kernel."""
    return neural_net_forward_packed(x, *prepack_params(w1, b1, w2, b2))


def init_params(key):
    """Deterministic init mirroring nn.Linear's U(-1/sqrt(fan_in), 1/sqrt(fan_in))."""
    k1, k2, k3, k4 = jax.random.split(key, 4)
    bound1 = 1.0 / jnp.sqrt(jnp.float32(INPUT_SIZE))
    bound2 = 1.0 / jnp.sqrt(jnp.float32(HIDDEN_SIZE))
    w1 = jax.random.uniform(k1, (INPUT_SIZE, HIDDEN_SIZE), jnp.float32,
                            minval=-bound1, maxval=bound1)
    b1 = jax.random.uniform(k2, (HIDDEN_SIZE,), jnp.float32,
                            minval=-bound1, maxval=bound1)
    w2 = jax.random.uniform(k3, (HIDDEN_SIZE, N_CLASSES), jnp.float32,
                            minval=-bound2, maxval=bound2)
    b2 = jax.random.uniform(k4, (N_CLASSES,), jnp.float32,
                            minval=-bound2, maxval=bound2)
    return w1, b1, w2, b2


if __name__ == "__main__":
    key = jax.random.PRNGKey(0)
    kx, kp = jax.random.split(key)

    w1, b1, w2, b2 = init_params(kp)
    packed = prepack_params(w1, b1, w2, b2)          # one-time prepack
    forward = jax.jit(neural_net_forward_packed)

    # B=32: exact tiling. B=40: exercises the masked partial last block.
    for B in (32, 40):
        x = jax.random.normal(jax.random.fold_in(kx, B), (B, INPUT_SIZE),
                              dtype=jnp.float32)
        out = jax.block_until_ready(forward(x, *packed))
        assert out.shape == (B, N_CLASSES)

        # Reference 1: same bf16-input / f32-accumulate math in plain JAX
        # (loose tol also absorbs the bf16 output store).
        xb = x.astype(jnp.bfloat16)
        h_ref = jnp.dot(xb, w1.astype(jnp.bfloat16),
                        preferred_element_type=jnp.float32) + b1[None, :]
        h_ref = jnp.maximum(h_ref, 0.0)
        ref_bf16 = jnp.dot(h_ref.astype(jnp.bfloat16), w2.astype(jnp.bfloat16),
                           preferred_element_type=jnp.float32) + b2[None, :]
        assert jnp.allclose(out, ref_bf16, atol=2e-2, rtol=2e-2)

        # Reference 2: pure f32 forward (original module semantics), loose
        # tolerance to account for bf16 matmul inputs / bf16 logit store.
        ref_f32 = jnp.maximum(x @ w1 + b1[None, :], 0.0) @ w2 + b2[None, :]
        assert jnp.allclose(out, ref_f32, atol=5e-2, rtol=5e-2)

    print("KERNEL_OK")
</pallas_src>

<mosaic_0001>
module attributes {stable_mosaic.version = 11 : i64} {
  func.func @_mlp_kernel(%arg0: i32, %arg1: memref<32x784xf32, #tpu.memory_space<vmem>>, %arg2: memref<784x128xbf16, #tpu.memory_space<vmem>>, %arg3: memref<1x128xf32, #tpu.memory_space<vmem>>, %arg4: memref<128x128xbf16, #tpu.memory_space<vmem>>, %arg5: memref<1x128xf32, #tpu.memory_space<vmem>>, %arg6: memref<32x128xbf16, #tpu.memory_space<vmem>>) attributes {dimension_semantics = [#tpu.dimension_semantics<parallel>], iteration_bounds = array<i64: 1>, scalar_prefetch = 0 : i64, scratch_operands = 0 : i64, tpu.core_type = #tpu.core_type<tc>, window_params = [{transform_indices = @transform_0, window_bounds = array<i64: 32, 784>}, {pipeline_mode = #tpu.pipeline_mode<synchronous>, transform_indices = @transform_1, window_bounds = array<i64: 784, 128>}, {pipeline_mode = #tpu.pipeline_mode<synchronous>, transform_indices = @transform_2, window_bounds = array<i64: 1, 128>}, {pipeline_mode = #tpu.pipeline_mode<synchronous>, transform_indices = @transform_3, window_bounds = array<i64: 128, 128>}, {pipeline_mode = #tpu.pipeline_mode<synchronous>, transform_indices = @transform_4, window_bounds = array<i64: 1, 128>}, {transform_indices = @transform_5, window_bounds = array<i64: 32, 128>}]} {
    %c0 = arith.constant 0 : index
    %c0_0 = arith.constant 0 : index
    %0 = vector.load %arg1[%c0, %c0_0] : memref<32x784xf32, #tpu.memory_space<vmem>>, vector<32x784xf32>
    %1 = arith.truncf %0 : vector<32x784xf32> to vector<32x784xbf16>
    %c0_1 = arith.constant 0 : index
    %c0_2 = arith.constant 0 : index
    %2 = vector.load %arg2[%c0_1, %c0_2] : memref<784x128xbf16, #tpu.memory_space<vmem>>, vector<784x128xbf16>
    %cst = arith.constant dense<0.000000e+00> : vector<32x128xf32>
    %3 = tpu.matmul %1, %2, %cst {dimension_numbers = #tpu.dot_dimension_numbers<[1], [0], [0], [1], [0, 0, 1, 1], [], []>} : vector<32x784xbf16>, vector<784x128xbf16>, vector<32x128xf32> -> vector<32x128xf32>
    %c0_3 = arith.constant 0 : index
    %c0_4 = arith.constant 0 : index
    %4 = vector.load %arg3[%c0_3, %c0_4] : memref<1x128xf32, #tpu.memory_space<vmem>>, vector<1x128xf32>
    %5 = vector.broadcast %4 : vector<1x128xf32> to vector<32x128xf32>
    %6 = arith.addf %3, %5 : vector<32x128xf32>
    %cst_5 = arith.constant 0.000000e+00 : f32
    %7 = vector.broadcast %cst_5 : f32 to vector<32x128xf32>
    %8 = arith.maximumf %6, %7 : vector<32x128xf32>
    %9 = arith.truncf %8 : vector<32x128xf32> to vector<32x128xbf16>
    %c0_6 = arith.constant 0 : index
    %c0_7 = arith.constant 0 : index
    %10 = vector.load %arg4[%c0_6, %c0_7] : memref<128x128xbf16, #tpu.memory_space<vmem>>, vector<128x128xbf16>
    %cst_8 = arith.constant dense<0.000000e+00> : vector<32x128xf32>
    %11 = tpu.matmul %9, %10, %cst_8 {dimension_numbers = #tpu.dot_dimension_numbers<[1], [0], [0], [1], [0, 0, 1, 1], [], []>} : vector<32x128xbf16>, vector<128x128xbf16>, vector<32x128xf32> -> vector<32x128xf32>
    %c0_9 = arith.constant 0 : index
    %c0_10 = arith.constant 0 : index
    %12 = vector.load %arg5[%c0_9, %c0_10] : memref<1x128xf32, #tpu.memory_space<vmem>>, vector<1x128xf32>
    %13 = vector.broadcast %12 : vector<1x128xf32> to vector<32x128xf32>
    %14 = arith.addf %11, %13 : vector<32x128xf32>
    %15 = arith.truncf %14 : vector<32x128xf32> to vector<32x128xbf16>
    %c0_11 = arith.constant 0 : index
    %c0_12 = arith.constant 0 : index
    %16 = vector.load %arg6[%c0_11, %c0_12] : memref<32x128xbf16, #tpu.memory_space<vmem>>, vector<32x128xbf16>
    tpu.vector_store %arg6[%c0_11, %c0_12], %15 {strides = array<i32>} : memref<32x128xbf16, #tpu.memory_space<vmem>>, vector<32x128xbf16>,
    return
  }
  func.func @transform_0(%arg0: i32) -> (i32, i32) {
    %c0_i32 = arith.constant 0 : i32
    %c0_i32_0 = arith.constant 0 : i32
    return %arg0, %c0_i32 : i32, i32
  }
  func.func @transform_1(%arg0: i32) -> (i32, i32) {
    %c0_i32 = arith.constant 0 : i32
    %c0_i32_0 = arith.constant 0 : i32
    %c0_i32_1 = arith.constant 0 : i32
    return %c0_i32, %c0_i32_0 : i32, i32
  }
  func.func @transform_2(%arg0: i32) -> (i32, i32) {
    %c0_i32 = arith.constant 0 : i32
    %c0_i32_0 = arith.constant 0 : i32
    %c0_i32_1 = arith.constant 0 : i32
    return %c0_i32, %c0_i32_0 : i32, i32
  }
  func.func @transform_3(%arg0: i32) -> (i32, i32) {
    %c0_i32 = arith.constant 0 : i32
    %c0_i32_0 = arith.constant 0 : i32
    %c0_i32_1 = arith.constant 0 : i32
    return %c0_i32, %c0_i32_0 : i32, i32
  }
  func.func @transform_4(%arg0: i32) -> (i32, i32) {
    %c0_i32 = arith.constant 0 : i32
    %c0_i32_0 = arith.constant 0 : i32
    %c0_i32_1 = arith.constant 0 : i32
    return %c0_i32, %c0_i32_0 : i32, i32
  }
  func.func @transform_5(%arg0: i32) -> (i32, i32) {
    %c0_i32 = arith.constant 0 : i32
    %c0_i32_0 = arith.constant 0 : i32
    return %arg0, %c0_i32 : i32, i32
  }
}

</mosaic_0001>

<llo_original>
// kernel: neural_net_forward_packed.1
$region0: #{neural_net_forward_packed.1}
  #allocation0 [shape = 'u32[]', space=smem, size = 0x4, offset = 0x4, fixed_abs, tag = 'smem constant byte address 0x4 - core index']
  #allocation1 [shape = 'u32[144,128]{1,0:T(1,128)}', space=vmem, size = 0x12000, scoped, tag = 'internal scratch']
  %s0 = inlined_call_operand.hbm [shape: f32[32,784], index: 0, kind: input, shape index: {}]
  %s1 = inlined_call_operand.hbm [shape: bf16[784,128], index: 1, kind: input, shape index: {}]
  %s2 = inlined_call_operand.vmem [shape: f32[1,128], index: 2, kind: input, shape index: {}]
  %s3 = inlined_call_operand.hbm [shape: bf16[128,128], index: 3, kind: input, shape index: {}]
  %s4 = inlined_call_operand.vmem [shape: f32[1,128], index: 4, kind: input, shape index: {}]
  %s5 = inlined_call_operand.vmem [shape: bf16[32,128], index: 5, kind: output, shape index: {}]
  %s6 = sld [smem:[#allocation0]]
  $region42: #{neural_net_forward_packed.1} parent=0
    _
  %s8 = ssub.s32 1, %s6
  %s9 = scalar_select 0, %s8, %s6
  $region1: #{neural_net_forward_packed.1} parent=0
    #allocation2 [shape = 'u8[114688]{0}', space=vmem, size = 0x1c000, scoped, tag = 'input window, operand 0, single buffered']
    #allocation3 [shape = 's32[1]{0}', space=sflag, size = 0x4, scoped, tag = 'scoped memory for neural_net_forward_packed.1']
    #allocation4 [shape = 'u8[200704]{0}', space=vmem, size = 0x31000, scoped, tag = 'input window, operand 1, single buffered']
    #allocation5 [shape = 's32[1]{0}', space=sflag, size = 0x4, scoped, tag = 'scoped memory for neural_net_forward_packed.1']
    #allocation6 [shape = 'u8[32768]{0}', space=vmem, size = 0x8000, scoped, tag = 'input window, operand 3, single buffered']
    %10 = vsyncpa [#allocation3], 0
    %11 = vsyncpa [#allocation5], 0
    // Predicated region
    $region2: #{neural_net_forward_packed.1} parent=1 // pred_check
      _
    $region3: #{neural_net_forward_packed.1} parent=1 // pred_check_branch
      %13 = sbr.rel (0) target = $region5
    $region4: #{neural_net_forward_packed.1} parent=1 // pred_region
      %s15 = ssub.s32 3584, 3584
      %16 = vsyncadd [#allocation3], %s15
      %s17 = sshll.u32 [#allocation2], 4
      %s18 = int_to_ptr.vmem [resolvable:$true] %s17
      %23 = dma.hbm_to_vmem [thread:$0]  %s0, 3584, %s18, [#allocation3], 896, 896, 56
    $region5: #{neural_net_forward_packed.1} parent=1 // pred_fallthru
      _
    // Predicated region
    $region6: #{neural_net_forward_packed.1} parent=1 // pred_check
      _
    $region7: #{neural_net_forward_packed.1} parent=1 // pred_check_branch
      %25 = sbr.rel (0) target = $region9
    $region8: #{neural_net_forward_packed.1} parent=1 // pred_region
      %s27 = ssub.s32 6272, 6272
      %28 = vsyncadd [#allocation5], %s27
      %s29 = sshll.u32 [#allocation4], 4
      %s30 = int_to_ptr.vmem [resolvable:$true] %s29
      %35 = dma.hbm_to_vmem [thread:$0]  %s1, 6272, %s30, [#allocation5], 64, 64, 4
    $region9: #{neural_net_forward_packed.1} parent=1 // pred_fallthru
      _
    // Predicated region
    $region10: #{neural_net_forward_packed.1} parent=1 // pred_check
      _
    $region11: #{neural_net_forward_packed.1} parent=1 // pred_check_branch
      %37 = sbr.rel (0) target = $region13
    $region12: #{neural_net_forward_packed.1} parent=1 // pred_region
      _
    $region13: #{neural_net_forward_packed.1} parent=1 // pred_fallthru
      _
    // Predicated region
    $region14: #{neural_net_forward_packed.1} parent=1 // pred_check
      _
    $region15: #{neural_net_forward_packed.1} parent=1 // pred_check_branch
      %39 = sbr.rel (0) target = $region17
    $region16: #{neural_net_forward_packed.1} parent=1 // pred_region
      %s41 = ssub.s32 1024, 1024
      %42 = vsyncadd [#allocation5], %s41
      %s43 = sshll.u32 [#allocation6], 4
      %s44 = int_to_ptr.vmem [resolvable:$true] %s43
      %49 = dma.hbm_to_vmem [thread:$0]  %s3, 1024, %s44, [#allocation5], 64, 64, 4
    $region17: #{neural_net_forward_packed.1} parent=1 // pred_fallthru
      _
    // Predicated region
    $region18: #{neural_net_forward_packed.1} parent=1 // pred_check
      _
    $region19: #{neural_net_forward_packed.1} parent=1 // pred_check_branch
      %51 = sbr.rel (0) target = $region21
    $region20: #{neural_net_forward_packed.1} parent=1 // pred_region
      _
    $region21: #{neural_net_forward_packed.1} parent=1 // pred_fallthru
      _
    // Predicated region
    $region22: #{neural_net_forward_packed.1} parent=1 // pred_check
      _
    $region23: #{neural_net_forward_packed.1} parent=1 // pred_check_branch
      %53 = sbr.rel (0) target = $region25
    $region24: #{neural_net_forward_packed.1} parent=1 // pred_region
      %54 = dma.done [#allocation3], 3584
    $region25: #{neural_net_forward_packed.1} parent=1 // pred_fallthru
      _
    // Predicated region
    $region26: #{neural_net_forward_packed.1} parent=1 // pred_check
      _
    $region27: #{neural_net_forward_packed.1} parent=1 // pred_check_branch
      %56 = sbr.rel (0) target = $region29
    $region28: #{neural_net_forward_packed.1} parent=1 // pred_region
      %57 = dma.done [#allocation5], 6272
    $region29: #{neural_net_forward_packed.1} parent=1 // pred_fallthru
      _
    // Predicated region
    $region30: #{neural_net_forward_packed.1} parent=1 // pred_check
      _
    $region31: #{neural_net_forward_packed.1} parent=1 // pred_check_branch
      %59 = sbr.rel (0) target = $region33
    $region32: #{neural_net_forward_packed.1} parent=1 // pred_region
      %60 = dma.done [#allocation5], 1024
    $region33: #{neural_net_forward_packed.1} parent=1 // pred_fallthru
      _
    %v62 = vld [vmem:[#allocation2] sm:$0xff]
    %v63 = vld [vmem:[#allocation2 + $0x8] sm:$0xff]
    %v64 = vld [vmem:[#allocation2 + $0x10] sm:$0xff]
    %v65 = vld [vmem:[#allocation2 + $0x18] sm:$0xff]
    %v66 = vld [vmem:[#allocation2 + $0x20] sm:$0xff]
    %v67 = vld [vmem:[#allocation2 + $0x28] sm:$0xff]
    %v68 = vld [vmem:[#allocation2 + $0x30] sm:$0xff]
    %v69 = vld [vmem:[#allocation2 + $0x38] sm:$0xff]
    %v70 = vld [vmem:[#allocation2 + $0x40] sm:$0xff]
    %v71 = vld [vmem:[#allocation2 + $0x48] sm:$0xff]
    %v72 = vld [vmem:[#allocation2 + $0x50] sm:$0xff]
    %v73 = vld [vmem:[#allocation2 + $0x58] sm:$0xff]
    %v74 = vld [vmem:[#allocation2 + $0x60] sm:$0xff]
    %v75 = vld [vmem:[#allocation2 + $0x68] sm:$0xff]
    %v76 = vld [vmem:[#allocation2 + $0x70] sm:$0xff]
    %v77 = vld [vmem:[#allocation2 + $0x78] sm:$0xff]
    %v78 = vld [vmem:[#allocation2 + $0x80] sm:$0xff]
    %v79 = vld [vmem:[#allocation2 + $0x88] sm:$0xff]
    %v80 = vld [vmem:[#allocation2 + $0x90] sm:$0xff]
    %v81 = vld [vmem:[#allocation2 + $0x98] sm:$0xff]
    %v82 = vld [vmem:[#allocation2 + $0xa0] sm:$0xff]
    %v83 = vld [vmem:[#allocation2 + $0xa8] sm:$0xff]
    %v84 = vld [vmem:[#allocation2 + $0xb0] sm:$0xff]
    %v85 = vld [vmem:[#allocation2 + $0xb8] sm:$0xff]
    %v86 = vld [vmem:[#allocation2 + $0xc0] sm:$0xff]
    %v87 = vld [vmem:[#allocation2 + $0xc8] sm:$0xff]
    %v88 = vld [vmem:[#allocation2 + $0xd0] sm:$0xff]
    %v89 = vld [vmem:[#allocation2 + $0xd8] sm:$0xff]
    %v90 = vpack.c.bf16 %v69, %v62
    %v91 = vpack.c.bf16 %v70, %v63
    %v92 = vpack.c.bf16 %v71, %v64
    %v93 = vpack.c.bf16 %v72, %v65
    %v94 = vpack.c.bf16 %v73, %v66
    %v95 = vpack.c.bf16 %v74, %v67
    %v96 = vpack.c.bf16 %v75, %v68
    %v97 = vpack.c.bf16 %v83, %v76
    %v98 = vpack.c.bf16 %v84, %v77
    %v99 = vpack.c.bf16 %v85, %v78
    %v100 = vpack.c.bf16 %v86, %v79
    %v101 = vpack.c.bf16 %v87, %v80
    %v102 = vpack.c.bf16 %v88, %v81
    %v103 = vpack.c.bf16 %v89, %v82
    %v104 = vld [vmem:[#allocation4] sm:$0xf]
    %v105 = vld [vmem:[#allocation4 + $0x4] sm:$0xf]
    %v106 = vld [vmem:[#allocation4 + $0x8] sm:$0xf]
    %v107 = vld [vmem:[#allocation4 + $0xc] sm:$0xf]
    %v108 = vld [vmem:[#allocation4 + $0x10] sm:$0xf]
    %v109 = vld [vmem:[#allocation4 + $0x14] sm:$0xf]
    %v110 = vld [vmem:[#allocation4 + $0x18] sm:$0xf]
    %v111 = vld [vmem:[#allocation4 + $0x1c] sm:$0xf]
    %v112 = vld [vmem:[#allocation4 + $0x20] sm:$0xf]
    %v113 = vld [vmem:[#allocation4 + $0x24] sm:$0xf]
    %v114 = vld [vmem:[#allocation4 + $0x28] sm:$0xf]
    %v115 = vld [vmem:[#allocation4 + $0x2c] sm:$0xf]
    %v116 = vld [vmem:[#allocation4 + $0x30] sm:$0xf]
    %v117 = vld [vmem:[#allocation4 + $0x34] sm:$0xf]
    %v118 = vld [vmem:[#allocation4 + $0x38] sm:$0xf]
    %v119 = vld [vmem:[#allocation4 + $0x3c] sm:$0xf]
    %v120 = vld [vmem:[#allocation4 + $0x40] sm:$0xf]
    %v121 = vld [vmem:[#allocation4 + $0x44] sm:$0xf]
    %v122 = vld [vmem:[#allocation4 + $0x48] sm:$0xf]
    %v123 = vld [vmem:[#allocation4 + $0x4c] sm:$0xf]
    %v124 = vld [vmem:[#allocation4 + $0x50] sm:$0xf]
    %v125 = vld [vmem:[#allocation4 + $0x54] sm:$0xf]
    %v126 = vld [vmem:[#allocation4 + $0x58] sm:$0xf]
    %v127 = vld [vmem:[#allocation4 + $0x5c] sm:$0xf]
    %v128 = vld [vmem:[#allocation4 + $0x60] sm:$0xf]
    %v129 = vld [vmem:[#allocation4 + $0x64] sm:$0xf]
    %v130 = vld [vmem:[#allocation4 + $0x68] sm:$0xf]
    %v131 = vld [vmem:[#allocation4 + $0x6c] sm:$0xf]
    %v132 = vld [vmem:[#allocation4 + $0x70] sm:$0xf]
    %v133 = vld [vmem:[#allocation4 + $0x74] sm:$0xf]
    %v134 = vld [vmem:[#allocation4 + $0x78] sm:$0xf]
    %v135 = vld [vmem:[#allocation4 + $0x7c] sm:$0xf]
    %v136 = vld [vmem:[#allocation4 + $0x80] sm:$0xf]
    %v137 = vld [vmem:[#allocation4 + $0x84] sm:$0xf]
    %v138 = vld [vmem:[#allocation4 + $0x88] sm:$0xf]
    %v139 = vld [vmem:[#allocation4 + $0x8c] sm:$0xf]
    %v140 = vld [vmem:[#allocation4 + $0x90] sm:$0xf]
    %v141 = vld [vmem:[#allocation4 + $0x94] sm:$0xf]
    %v142 = vld [vmem:[#allocation4 + $0x98] sm:$0xf]
    %v143 = vld [vmem:[#allocation4 + $0x9c] sm:$0xf]
    %v144 = vld [vmem:[#allocation4 + $0xa0] sm:$0xf]
    %v145 = vld [vmem:[#allocation4 + $0xa4] sm:$0xf]
    %v146 = vld [vmem:[#allocation4 + $0xa8] sm:$0xf]
    %v147 = vld [vmem:[#allocation4 + $0xac] sm:$0xf]
    %v148 = vld [vmem:[#allocation4 + $0xb0] sm:$0xf]
    %v149 = vld [vmem:[#allocation4 + $0xb4] sm:$0xf]
    %v150 = vld [vmem:[#allocation4 + $0xb8] sm:$0xf]
    %v151 = vld [vmem:[#allocation4 + $0xbc] sm:$0xf]
    %v152 = vld [vmem:[#allocation4 + $0xc0] sm:$0xf]
    %v153 = vld [vmem:[#allocation4 + $0xc4] sm:$0xf]
    %v154 = vld [vmem:[#allocation4 + $0xc8] sm:$0xf]
    %v155 = vld [vmem:[#allocation4 + $0xcc] sm:$0xf]
    %v156 = vld [vmem:[#allocation4 + $0xd0] sm:$0xf]
    %v157 = vld [vmem:[#allocation4 + $0xd4] sm:$0xf]
    %v158 = vld [vmem:[#allocation4 + $0xd8] sm:$0xf]
    %v159 = vld [vmem:[#allocation4 + $0xdc] sm:$0xf]
    %v160 = vld [vmem:[#allocation4 + $0xe0] sm:$0xf]
    %v161 = vld [vmem:[#allocation4 + $0xe4] sm:$0xf]
    %v162 = vld [vmem:[#allocation4 + $0xe8] sm:$0xf]
    %v163 = vld [vmem:[#allocation4 + $0xec] sm:$0xf]
    %v164 = vld [vmem:[#allocation4 + $0xf0] sm:$0xf]
    %v165 = vld [vmem:[#allocation4 + $0xf4] sm:$0xf]
    %v166 = vld [vmem:[#allocation4 + $0xf8] sm:$0xf]
    %v167 = vld [vmem:[#allocation4 + $0xfc] sm:$0xf]
    %v168 = vld [vmem:[#allocation4 + $0x100] sm:$0xf]
    %v169 = vld [vmem:[#allocation4 + $0x104] sm:$0xf]
    %v170 = vld [vmem:[#allocation4 + $0x108] sm:$0xf]
    %v171 = vld [vmem:[#allocation4 + $0x10c] sm:$0xf]
    %v172 = vld [vmem:[#allocation4 + $0x110] sm:$0xf]
    %v173 = vld [vmem:[#allocation4 + $0x114] sm:$0xf]
    %v174 = vld [vmem:[#allocation4 + $0x118] sm:$0xf]
    %v175 = vld [vmem:[#allocation4 + $0x11c] sm:$0xf]
    %v176 = vld [vmem:[#allocation4 + $0x120] sm:$0xf]
    %v177 = vld [vmem:[#allocation4 + $0x124] sm:$0xf]
    %v178 = vld [vmem:[#allocation4 + $0x128] sm:$0xf]
    %v179 = vld [vmem:[#allocation4 + $0x12c] sm:$0xf]
    %v180 = vld [vmem:[#allocation4 + $0x130] sm:$0xf]
    %v181 = vld [vmem:[#allocation4 + $0x134] sm:$0xf]
    %v182 = vld [vmem:[#allocation4 + $0x138] sm:$0xf]
    %v183 = vld [vmem:[#allocation4 + $0x13c] sm:$0xf]
    %v184 = vld [vmem:[#allocation4 + $0x140] sm:$0xf]
    %v185 = vld [vmem:[#allocation4 + $0x144] sm:$0xf]
    %v186 = vld [vmem:[#allocation4 + $0x148] sm:$0xf]
    %v187 = vld [vmem:[#allocation4 + $0x14c] sm:$0xf]
    %v188 = vld [vmem:[#allocation4 + $0x150] sm:$0xf]
    %v189 = vld [vmem:[#allocation4 + $0x154] sm:$0xf]
    %v190 = vld [vmem:[#allocation4 + $0x158] sm:$0xf]
    %v191 = vld [vmem:[#allocation4 + $0x15c] sm:$0xf]
    %v192 = vld [vmem:[#allocation4 + $0x160] sm:$0xf]
    %v193 = vld [vmem:[#allocation4 + $0x164] sm:$0xf]
    %v194 = vld [vmem:[#allocation4 + $0x168] sm:$0xf]
    %v195 = vld [vmem:[#allocation4 + $0x16c] sm:$0xf]
    %v196 = vld [vmem:[#allocation4 + $0x170] sm:$0xf]
    %v197 = vld [vmem:[#allocation4 + $0x174] sm:$0xf]
    %v198 = vld [vmem:[#allocation4 + $0x178] sm:$0xf]
    %v199 = vld [vmem:[#allocation4 + $0x17c] sm:$0xf]
    %v200 = vld [vmem:[#allocation4 + $0x180] sm:$0xf]
    %v201 = vld [vmem:[#allocation4 + $0x184] sm:$0xf]
    %v202 = vld [vmem:[%s2] sm:$0x1]
    %v204 = vlaneseq
    %v205 = vshrl.u32 %v204, 7
    %v206 = vsub.s32 0, %v205
    %v207 = vrot.slane %v202, %v206
    %v307 = vunpack.c.l.b16 %v104
    %v308 = vunpack.c.l.b16 %v105
    %v309 = vunpack.c.l.b16 %v106
    %v310 = vunpack.c.l.b16 %v107
    %v311 = vunpack.c.l.b16 %v108
    %v312 = vunpack.c.l.b16 %v109
    %v313 = vunpack.c.l.b16 %v110
    %v314 = vunpack.c.l.b16 %v111
    %v315 = vunpack.c.l.b16 %v112
    %v316 = vunpack.c.l.b16 %v113
    %v317 = vunpack.c.l.b16 %v114
    %v318 = vunpack.c.l.b16 %v115
    %v319 = vunpack.c.l.b16 %v116
    %v320 = vunpack.c.l.b16 %v117
    %v321 = vunpack.c.l.b16 %v118
    %v322 = vunpack.c.l.b16 %v119
    %v323 = vunpack.c.l.b16 %v120
    %v324 = vunpack.c.l.b16 %v121
    %v325 = vunpack.c.l.b16 %v122
    %v326 = vunpack.c.l.b16 %v123
    %v327 = vunpack.c.l.b16 %v124
    %v328 = vunpack.c.l.b16 %v125
    %v329 = vunpack.c.l.b16 %v126
    %v330 = vunpack.c.l.b16 %v127
    %v331 = vunpack.c.l.b16 %v128
    %v332 = vunpack.c.l.b16 %v129
    %v333 = vunpack.c.l.b16 %v130
    %v334 = vunpack.c.l.b16 %v131
    %v335 = vunpack.c.l.b16 %v132
    %v336 = vunpack.c.l.b16 %v133
    %v337 = vunpack.c.l.b16 %v134
    %v338 = vunpack.c.l.b16 %v135
    %v339 = vunpack.c.l.b16 %v136
    %v340 = vunpack.c.l.b16 %v137
    %v341 = vunpack.c.l.b16 %v138
    %v342 = vunpack.c.l.b16 %v139
    %v343 = vunpack.c.l.b16 %v140
    %v344 = vunpack.c.l.b16 %v141
    %v345 = vunpack.c.l.b16 %v142
    %v346 = vunpack.c.l.b16 %v143
    %v347 = vunpack.c.l.b16 %v144
    %v348 = vunpack.c.l.b16 %v145
    %v349 = vunpack.c.l.b16 %v146
    %v350 = vunpack.c.l.b16 %v147
    %v351 = vunpack.c.l.b16 %v148
    %v352 = vunpack.c.l.b16 %v149
    %v353 = vunpack.c.l.b16 %v150
    %v354 = vunpack.c.l.b16 %v151
    %v355 = vunpack.c.l.b16 %v152
    %v356 = vunpack.c.l.b16 %v153
    %v357 = vunpack.c.l.b16 %v154
    %v358 = vunpack.c.l.b16 %v155
    %v359 = vunpack.c.l.b16 %v156
    %v360 = vunpack.c.l.b16 %v157
    %v361 = vunpack.c.l.b16 %v158
    %v362 = vunpack.c.l.b16 %v159
    %v363 = vunpack.c.l.b16 %v160
    %v364 = vunpack.c.l.b16 %v161
    %v365 = vunpack.c.l.b16 %v162
    %v366 = vunpack.c.l.b16 %v163
    %v367 = vunpack.c.l.b16 %v164
    %v368 = vunpack.c.l.b16 %v165
    %v369 = vunpack.c.l.b16 %v166
    %v370 = vunpack.c.l.b16 %v167
    %v371 = vunpack.c.l.b16 %v168
    %v372 = vunpack.c.l.b16 %v169
    %v373 = vunpack.c.l.b16 %v170
    %v374 = vunpack.c.l.b16 %v171
    %v375 = vunpack.c.l.b16 %v172
    %v376 = vunpack.c.l.b16 %v173
    %v377 = vunpack.c.l.b16 %v174
    %v378 = vunpack.c.l.b16 %v175
    %v379 = vunpack.c.l.b16 %v176
    %v380 = vunpack.c.l.b16 %v177
    %v381 = vunpack.c.l.b16 %v178
    %v382 = vunpack.c.l.b16 %v179
    %v383 = vunpack.c.l.b16 %v180
    %v384 = vunpack.c.l.b16 %v181
    %v385 = vunpack.c.l.b16 %v182
    %v386 = vunpack.c.l.b16 %v183
    %v387 = vunpack.c.l.b16 %v184
    %v388 = vunpack.c.l.b16 %v185
    %v389 = vunpack.c.l.b16 %v186
    %v390 = vunpack.c.l.b16 %v187
    %v391 = vunpack.c.l.b16 %v188
    %v392 = vunpack.c.l.b16 %v189
    %v393 = vunpack.c.l.b16 %v190
    %v394 = vunpack.c.l.b16 %v191
    %v395 = vunpack.c.l.b16 %v192
    %v396 = vunpack.c.l.b16 %v193
    %v397 = vunpack.c.l.b16 %v194
    %v398 = vunpack.c.l.b16 %v195
    %v399 = vunpack.c.l.b16 %v196
    %v400 = vunpack.c.l.b16 %v197
    %v401 = vunpack.c.l.b16 %v198
    %v402 = vunpack.c.l.b16 %v199
    %v403 = vunpack.c.l.b16 %v200
    %v404 = vunpack.c.l.b16 %v201
    %v405 = vpack.c.b16 %v308, %v307
    %v406 = vpack.c.b16 %v310, %v309
    %v407 = vpack.c.b16 %v312, %v311
    %v408 = vpack.c.b16 %v314, %v313
    %v409 = vpack.c.b16 %v316, %v315
    %v410 = vpack.c.b16 %v318, %v317
    %v411 = vpack.c.b16 %v320, %v319
    %v412 = vpack.c.b16 %v322, %v321
    %v413 = vpack.c.b16 %v324, %v323
    %v414 = vpack.c.b16 %v326, %v325
    %v415 = vpack.c.b16 %v328, %v327
    %v416 = vpack.c.b16 %v330, %v329
    %v417 = vpack.c.b16 %v332, %v331
    %v418 = vpack.c.b16 %v334, %v333
    %v419 = vpack.c.b16 %v336, %v335
    %v420 = vpack.c.b16 %v338, %v337
    %v421 = vpack.c.b16 %v340, %v339
    %v422 = vpack.c.b16 %v342, %v341
    %v423 = vpack.c.b16 %v344, %v343
    %v424 = vpack.c.b16 %v346, %v345
    %v425 = vpack.c.b16 %v348, %v347
    %v426 = vpack.c.b16 %v350, %v349
    %v427 = vpack.c.b16 %v352, %v351
    %v428 = vpack.c.b16 %v354, %v353
    %v429 = vpack.c.b16 %v356, %v355
    %v430 = vpack.c.b16 %v358, %v357
    %v431 = vpack.c.b16 %v360, %v359
    %v432 = vpack.c.b16 %v362, %v361
    %v433 = vpack.c.b16 %v364, %v363
    %v434 = vpack.c.b16 %v366, %v365
    %v435 = vpack.c.b16 %v368, %v367
    %v436 = vpack.c.b16 %v370, %v369
    %v437 = vpack.c.b16 %v372, %v371
    %v438 = vpack.c.b16 %v374, %v373
    %v439 = vpack.c.b16 %v376, %v375
    %v440 = vpack.c.b16 %v378, %v377
    %v441 = vpack.c.b16 %v380, %v379
    %v442 = vpack.c.b16 %v382, %v381
    %v443 = vpack.c.b16 %v384, %v383
    %v444 = vpack.c.b16 %v386, %v385
    %v445 = vpack.c.b16 %v388, %v387
    %v446 = vpack.c.b16 %v390, %v389
    %v447 = vpack.c.b16 %v392, %v391
    %v448 = vpack.c.b16 %v394, %v393
    %v449 = vpack.c.b16 %v396, %v395
    %v450 = vpack.c.b16 %v398, %v397
    %v451 = vpack.c.b16 %v400, %v399
    %v452 = vpack.c.b16 %v402, %v401
    %v453 = vpack.c.b16 %v404, %v403
    %vm503 = vcmask 130048
    %v505 = vsel %vm503, %v96, 0
    %v508 = vsel %vm503, %v103, 0
    %510 = vmatprep.subr.bf16.mxu0 0
    %511 = vmatpush1.bf16.msra.mxu0 %v405
    %512 = vmatprep.subr.bf16.mxu0 0
    %513 = vmatpush1.bf16.msra.mxu0 %v406
    %514 = vmatprep.subr.bf16.mxu0 0
    %515 = vmatpush1.bf16.msra.mxu0 %v407
    %516 = vmatprep.subr.bf16.mxu0 0
    %517 = vmatpush1.bf16.msra.mxu0 %v408
    %518 = vmatprep.subr.bf16.mxu0 0
    %519 = vmatpush1.bf16.msra.mxu0 %v409
    %520 = vmatprep.subr.bf16.mxu0 0
    %521 = vmatpush1.bf16.msra.mxu0 %v410
    %522 = vmatprep.subr.bf16.mxu0 0
    %523 = vmatpush1.bf16.msra.mxu0 %v411
    %524 = vmatprep.subr.bf16.mxu0 0
    %525 = vmatpush1.bf16.msra.mxu0 %v412
    %526 = vmatprep.subr.bf16.mxu0 0
    %527 = vmatpush1.bf16.msra.mxu0 %v413
    %528 = vmatprep.subr.bf16.mxu0 0
    %529 = vmatpush1.bf16.msra.mxu0 %v414
    %530 = vmatprep.subr.bf16.mxu0 0
    %531 = vmatpush1.bf16.msra.mxu0 %v415
    %532 = vmatprep.subr.bf16.mxu0 0
    %533 = vmatpush1.bf16.msra.mxu0 %v416
    %534 = vmatprep.subr.bf16.mxu0 0
    %535 = vmatpush1.bf16.msra.mxu0 %v417
    %536 = vmatprep.subr.bf16.mxu0 0
    %537 = vmatpush1.bf16.msra.mxu0 %v418
    %538 = vmatprep.subr.bf16.mxu0 0
    %539 = vmatpush1.bf16.msra.mxu0 %v419
    %540 = vmatprep.subr.bf16.mxu0 0
    %541 = vmatpush1.bf16.msra.mxu0 %v420
    %542 = vmatprep.mubr.bf16.mxu0 %v91
    %543 = vmatmul.mubr.bf16.gmra.mrb[0].mxu0 %v90
    %v544 = vpop.f32.mrb[0].mxu0
    %v545 = vadd.f32 %v207, %v544
    %v546 = vpop.f32.mrb[0].mxu0
    %v547 = vpop.f32.mrb[0].mxu0
    %v548 = vadd.f32 %v207, %v547
    %v549 = vpop.f32.mrb[0].mxu0
    %550 = vmatprep.mubr.bf16.mxu0 %v98
    %551 = vmatmul.mubr.bf16.gmra.mrb[0].mxu0 %v97
    %v552 = vpop.f32.mrb[0].mxu0
    %v553 = vadd.f32 %v207, %v552
    %v554 = vpop.f32.mrb[0].mxu0
    %v555 = vpop.f32.mrb[0].mxu0
    %v556 = vadd.f32 %v207, %v555
    %v557 = vpop.f32.mrb[0].mxu0
    %558 = vdwg.mxu0
    %559 = vmatprep.subr.bf16.mxu0 0
    %560 = vmatpush1.bf16.msra.mxu0 %v421
    %561 = vmatprep.subr.bf16.mxu0 0
    %562 = vmatpush1.bf16.msra.mxu0 %v422
    %563 = vmatprep.subr.bf16.mxu0 0
    %564 = vmatpush1.bf16.msra.mxu0 %v423
    %565 = vmatprep.subr.bf16.mxu0 0
    %566 = vmatpush1.bf16.msra.mxu0 %v424
    %567 = vmatprep.subr.bf16.mxu0 0
    %568 = vmatpush1.bf16.msra.mxu0 %v425
    %569 = vmatprep.subr.bf16.mxu0 0
    %570 = vmatpush1.bf16.msra.mxu0 %v426
    %571 = vmatprep.subr.bf16.mxu0 0
    %572 = vmatpush1.bf16.msra.mxu0 %v427
    %573 = vmatprep.subr.bf16.mxu0 0
    %574 = vmatpush1.bf16.msra.mxu0 %v428
    %575 = vmatprep.subr.bf16.mxu0 0
    %576 = vmatpush1.bf16.msra.mxu0 %v429
    %577 = vmatprep.subr.bf16.mxu0 0
    %578 = vmatpush1.bf16.msra.mxu0 %v430
    %579 = vmatprep.subr.bf16.mxu0 0
    %580 = vmatpush1.bf16.msra.mxu0 %v431
    %581 = vmatprep.subr.bf16.mxu0 0
    %582 = vmatpush1.bf16.msra.mxu0 %v432
    %583 = vmatprep.subr.bf16.mxu0 0
    %584 = vmatpush1.bf16.msra.mxu0 %v433
    %585 = vmatprep.subr.bf16.mxu0 0
    %586 = vmatpush1.bf16.msra.mxu0 %v434
    %587 = vmatprep.subr.bf16.mxu0 0
    %588 = vmatpush1.bf16.msra.mxu0 %v435
    %589 = vmatprep.subr.bf16.mxu0 0
    %590 = vmatpush1.bf16.msra.mxu0 %v436
    %591 = vmatprep.mubr.bf16.mxu0 %v93
    %592 = vmatmul.mubr.bf16.gmra.mrb[0].mxu0 %v92
    %v593 = vpop.f32.mrb[0].mxu0
    %v594 = vadd.f32 %v545, %v593
    %v595 = vpop.f32.mrb[0].mxu0
    %v596 = vpop.f32.mrb[0].mxu0
    %v597 = vadd.f32 %v548, %v596
    %v598 = vpop.f32.mrb[0].mxu0
    %599 = vmatprep.mubr.bf16.mxu0 %v100
    %600 = vmatmul.mubr.bf16.gmra.mrb[0].mxu0 %v99
    %v601 = vpop.f32.mrb[0].mxu0
    %v602 = vadd.f32 %v553, %v601
    %v603 = vpop.f32.mrb[0].mxu0
    %v604 = vpop.f32.mrb[0].mxu0
    %v605 = vadd.f32 %v556, %v604
    %v606 = vpop.f32.mrb[0].mxu0
    %607 = vdwg.mxu0
    %608 = vmatprep.subr.bf16.mxu0 0
    %609 = vmatpush1.bf16.msra.mxu0 %v437
    %610 = vmatprep.subr.bf16.mxu0 0
    %611 = vmatpush1.bf16.msra.mxu0 %v438
    %612 = vmatprep.subr.bf16.mxu0 0
    %613 = vmatpush1.bf16.msra.mxu0 %v439
    %614 = vmatprep.subr.bf16.mxu0 0
    %615 = vmatpush1.bf16.msra.mxu0 %v440
    %616 = vmatprep.subr.bf16.mxu0 0
    %617 = vmatpush1.bf16.msra.mxu0 %v441
    %618 = vmatprep.subr.bf16.mxu0 0
    %619 = vmatpush1.bf16.msra.mxu0 %v442
    %620 = vmatprep.subr.bf16.mxu0 0
    %621 = vmatpush1.bf16.msra.mxu0 %v443
    %622 = vmatprep.subr.bf16.mxu0 0
    %623 = vmatpush1.bf16.msra.mxu0 %v444
    %624 = vmatprep.subr.bf16.mxu0 0
    %625 = vmatpush1.bf16.msra.mxu0 %v445
    %626 = vmatprep.subr.bf16.mxu0 0
    %627 = vmatpush1.bf16.msra.mxu0 %v446
    %628 = vmatprep.subr.bf16.mxu0 0
    %629 = vmatpush1.bf16.msra.mxu0 %v447
    %630 = vmatprep.subr.bf16.mxu0 0
    %631 = vmatpush1.bf16.msra.mxu0 %v448
    %632 = vmatprep.subr.bf16.mxu0 0
    %633 = vmatpush1.bf16.msra.mxu0 %v449
    %634 = vmatprep.subr.bf16.mxu0 0
    %635 = vmatpush1.bf16.msra.mxu0 %v450
    %636 = vmatprep.subr.bf16.mxu0 0
    %637 = vmatpush1.bf16.msra.mxu0 %v451
    %638 = vmatprep.subr.bf16.mxu0 0
    %639 = vmatpush1.bf16.msra.mxu0 %v452
    %640 = vmatprep.mubr.bf16.mxu0 %v95
    %641 = vmatmul.mubr.bf16.gmra.mrb[0].mxu0 %v94
    %v642 = vpop.f32.mrb[0].mxu0
    %v643 = vadd.f32 %v594, %v642
    %v644 = vpop.f32.mrb[0].mxu0
    %v645 = vpop.f32.mrb[0].mxu0
    %v646 = vadd.f32 %v597, %v645
    %v647 = vpop.f32.mrb[0].mxu0
    %648 = vmatprep.mubr.bf16.mxu0 %v102
    %649 = vmatmul.mubr.bf16.gmra.mrb[0].mxu0 %v101
    %v650 = vpop.f32.mrb[0].mxu0
    %v651 = vadd.f32 %v602, %v650
    %v652 = vpop.f32.mrb[0].mxu0
    %v653 = vpop.f32.mrb[0].mxu0
    %v654 = vadd.f32 %v605, %v653
    %v655 = vpop.f32.mrb[0].mxu0
    %656 = vdwg.mxu0
    %657 = vmatprep.subr.bf16.mxu0 0
    %658 = vmatpush1.bf16.msra.mxu0 %v453
    %659 = vmatprep.subr.bf16.mxu0 0
    %660 = vmatpush1.bf16.msra.mxu0 0
    %661 = vmatprep.subr.bf16.mxu0 0
    %662 = vmatpush1.bf16.msra.mxu0 0
    %663 = vmatprep.subr.bf16.mxu0 0
    %664 = vmatpush1.bf16.msra.mxu0 0
    %665 = vmatprep.subr.bf16.mxu0 0
    %666 = vmatpush1.bf16.msra.mxu0 0
    %667 = vmatprep.subr.bf16.mxu0 0
    %668 = vmatpush1.bf16.msra.mxu0 0
    %669 = vmatprep.subr.bf16.mxu0 0
    %670 = vmatpush1.bf16.msra.mxu0 0
    %671 = vmatprep.subr.bf16.mxu0 0
    %672 = vmatpush1.bf16.msra.mxu0 0
    %673 = vmatprep.subr.bf16.mxu0 0
    %674 = vmatpush1.bf16.msra.mxu0 0
    %675 = vmatprep.subr.bf16.mxu0 0
    %676 = vmatpush1.bf16.msra.mxu0 0
    %677 = vmatprep.subr.bf16.mxu0 0
    %678 = vmatpush1.bf16.msra.mxu0 0
    %679 = vmatprep.subr.bf16.mxu0 0
    %680 = vmatpush1.bf16.msra.mxu0 0
    %681 = vmatprep.subr.bf16.mxu0 0
    %682 = vmatpush1.bf16.msra.mxu0 0
    %683 = vmatprep.subr.bf16.mxu0 0
    %684 = vmatpush1.bf16.msra.mxu0 0
    %685 = vmatprep.subr.bf16.mxu0 0
    %686 = vmatpush1.bf16.msra.mxu0 0
    %687 = vmatprep.subr.bf16.mxu0 0
    %688 = vmatpush1.bf16.msra.mxu0 0
    %689 = vmatprep.mubr.bf16.mxu0 0
    %690 = vmatmul.mubr.bf16.gmra.mrb[0].mxu0 %v505
    %v691 = vpop.f32.mrb[0].mxu0
    %v692 = vadd.f32 %v643, %v691
    %v693 = vpop.f32.mrb[0].mxu0
    %v694 = vpop.f32.mrb[0].mxu0
    %v695 = vadd.f32 %v646, %v694
    %v696 = vpop.f32.mrb[0].mxu0
    %697 = vmatprep.mubr.bf16.mxu0 0
    %698 = vmatmul.mubr.bf16.gmra.mrb[0].mxu0 %v508
    %v699 = vpop.f32.mrb[0].mxu0
    %v700 = vadd.f32 %v651, %v699
    %v701 = vpop.f32.mrb[0].mxu0
    %v702 = vpop.f32.mrb[0].mxu0
    %v703 = vadd.f32 %v654, %v702
    %v704 = vpop.f32.mrb[0].mxu0
    %705 = vdwg.mxu0
    %v706 = vmax.f32 %v692, 0.0
    %v707 = vmax.f32 %v695, 0.0
    %v708 = vmax.f32 %v700, 0.0
    %v709 = vmax.f32 %v703, 0.0
    %v710 = vpack.c.bf16 %v707, %v706
    %v711 = vpack.c.bf16 %v709, %v708
    %v712 = vld [vmem:[#allocation6] sm:$0xf]
    %v713 = vld [vmem:[#allocation6 + $0x4] sm:$0xf]
    %v714 = vld [vmem:[#allocation6 + $0x8] sm:$0xf]
    %v715 = vld [vmem:[#allocation6 + $0xc] sm:$0xf]
    %v716 = vld [vmem:[#allocation6 + $0x10] sm:$0xf]
    %v717 = vld [vmem:[#allocation6 + $0x14] sm:$0xf]
    %v718 = vld [vmem:[#allocation6 + $0x18] sm:$0xf]
    %v719 = vld [vmem:[#allocation6 + $0x1c] sm:$0xf]
    %v720 = vld [vmem:[#allocation6 + $0x20] sm:$0xf]
    %v721 = vld [vmem:[#allocation6 + $0x24] sm:$0xf]
    %v722 = vld [vmem:[#allocation6 + $0x28] sm:$0xf]
    %v723 = vld [vmem:[#allocation6 + $0x2c] sm:$0xf]
    %v724 = vld [vmem:[#allocation6 + $0x30] sm:$0xf]
    %v725 = vld [vmem:[#allocation6 + $0x34] sm:$0xf]
    %v726 = vld [vmem:[#allocation6 + $0x38] sm:$0xf]
    %v727 = vld [vmem:[#allocation6 + $0x3c] sm:$0xf]
    %v728 = vld [vmem:[%s4] sm:$0x1]
    %v730 = vlaneseq
    %v731 = vshrl.u32 %v730, 7
    %v732 = vsub.s32 0, %v731
    %v733 = vrot.slane %v728, %v732
    %v751 = vunpack.c.l.b16 %v712
    %v752 = vunpack.c.l.b16 %v713
    %v753 = vunpack.c.l.b16 %v714
    %v754 = vunpack.c.l.b16 %v715
    %v755 = vunpack.c.l.b16 %v716
    %v756 = vunpack.c.l.b16 %v717
    %v757 = vunpack.c.l.b16 %v718
    %v758 = vunpack.c.l.b16 %v719
    %v759 = vunpack.c.l.b16 %v720
    %v760 = vunpack.c.l.b16 %v721
    %v761 = vunpack.c.l.b16 %v722
    %v762 = vunpack.c.l.b16 %v723
    %v763 = vunpack.c.l.b16 %v724
    %v764 = vunpack.c.l.b16 %v725
    %v765 = vunpack.c.l.b16 %v726
    %v766 = vunpack.c.l.b16 %v727
    %v767 = vpack.c.b16 %v752, %v751
    %v768 = vpack.c.b16 %v754, %v753
    %v769 = vpack.c.b16 %v756, %v755
    %v770 = vpack.c.b16 %v758, %v757
    %v771 = vpack.c.b16 %v760, %v759
    %v772 = vpack.c.b16 %v762, %v761
    %v773 = vpack.c.b16 %v764, %v763
    %v774 = vpack.c.b16 %v766, %v765
    %783 = vmatprep.subr.bf16.mxu0 0
    %784 = vmatpush1.bf16.msra.mxu0 %v767
    %785 = vmatprep.subr.bf16.mxu0 0
    %786 = vmatpush1.bf16.msra.mxu0 %v768
    %787 = vmatprep.subr.bf16.mxu0 0
    %788 = vmatpush1.bf16.msra.mxu0 %v769
    %789 = vmatprep.subr.bf16.mxu0 0
    %790 = vmatpush1.bf16.msra.mxu0 %v770
    %791 = vmatprep.subr.bf16.mxu0 0
    %792 = vmatpush1.bf16.msra.mxu0 %v771
    %793 = vmatprep.subr.bf16.mxu0 0
    %794 = vmatpush1.bf16.msra.mxu0 %v772
    %795 = vmatprep.subr.bf16.mxu0 0
    %796 = vmatpush1.bf16.msra.mxu0 %v773
    %797 = vmatprep.subr.bf16.mxu0 0
    %798 = vmatpush1.bf16.msra.mxu0 %v774
    %799 = vmatprep.subr.bf16.mxu0 0
    %800 = vmatpush1.bf16.msra.mxu0 0
    %801 = vmatprep.subr.bf16.mxu0 0
    %802 = vmatpush1.bf16.msra.mxu0 0
    %803 = vmatprep.subr.bf16.mxu0 0
    %804 = vmatpush1.bf16.msra.mxu0 0
    %805 = vmatprep.subr.bf16.mxu0 0
    %806 = vmatpush1.bf16.msra.mxu0 0
    %807 = vmatprep.subr.bf16.mxu0 0
    %808 = vmatpush1.bf16.msra.mxu0 0
    %809 = vmatprep.subr.bf16.mxu0 0
    %810 = vmatpush1.bf16.msra.mxu0 0
    %811 = vmatprep.subr.bf16.mxu0 0
    %812 = vmatpush1.bf16.msra.mxu0 0
    %813 = vmatprep.subr.bf16.mxu0 0
    %814 = vmatpush1.bf16.msra.mxu0 0
    %815 = vmatprep.mubr.bf16.mxu0 0
    %816 = vmatmul.mubr.bf16.gmra.mrb[0].mxu0 %v710
    %v817 = vpop.f32.mrb[0].mxu0
    %v818 = vadd.f32 %v733, %v817
    %v819 = vpop.f32.mrb[0].mxu0
    %v820 = vpop.f32.mrb[0].mxu0
    %v821 = vadd.f32 %v733, %v820
    %v822 = vpop.f32.mrb[0].mxu0
    %823 = vmatprep.mubr.bf16.mxu0 0
    %824 = vmatmul.mubr.bf16.gmra.mrb[0].mxu0 %v711
    %v825 = vpop.f32.mrb[0].mxu0
    %v826 = vadd.f32 %v733, %v825
    %v827 = vpop.f32.mrb[0].mxu0
    %v828 = vpop.f32.mrb[0].mxu0
    %v829 = vadd.f32 %v733, %v828
    %v830 = vpop.f32.mrb[0].mxu0
    %831 = vdwg.mxu0
    %v832 = vpack.c.bf16 %v821, %v818
    %v833 = vpack.c.bf16 %v829, %v826
    %v836 = vunpack.c.l.b16 %v832
    %v837 = vunpack.c.h.b16 %v832
    %v838 = vunpack.c.l.b16 %v833
    %v839 = vunpack.c.h.b16 %v833
    %v840 = vpack.c.b16 %v836, %v836
    %v841 = vpack.c.b16 %v837, %v837
    %v842 = vpack.c.b16 %v838, %v838
    %v843 = vpack.c.b16 %v839, %v839
    %848 = vst [vmem:[%s5] sm:$0xf] %v840
    %849 = vst [vmem:[%s5 + $0x4] sm:$0xf] %v841
    %850 = vst [vmem:[%s5 + $0x8] sm:$0xf] %v842
    %851 = vst [vmem:[%s5 + $0xc] sm:$0xf] %v843
    // Predicated region
    $region34: #{neural_net_forward_packed.1} parent=1 // pred_check
      _
    $region35: #{neural_net_forward_packed.1} parent=1 // pred_check_branch
      %853 = sbr.rel (0) target = $region37
    $region36: #{neural_net_forward_packed.1} parent=1 // pred_region
      _
    $region37: #{neural_net_forward_packed.1} parent=1 // pred_fallthru
      _
    // Predicated region
    $region38: #{neural_net_forward_packed.1} parent=1 // pred_check
      _
    $region39: #{neural_net_forward_packed.1} parent=1 // pred_check_branch
      %855 = sbr.rel (0) target = $region41
    $region40: #{neural_net_forward_packed.1} parent=1 // pred_region
      _
    $region41: #{neural_net_forward_packed.1} parent=1 // pred_fallthru
      _
    %856 = vsyncpa [#allocation3], 1
    %857 = vsyncpa [#allocation5], 1

</llo_original>
